<compile_context>
chip_gen: v5e
topology: v5e:2x2
jax: 0.10.0
libtpu: 0.0.40
codegen_flags: <defaults>
</compile_context>

<pallas_src>
import jax
import jax.numpy as jnp
from jax import lax
from jax.experimental import pallas as pl
from jax.experimental.pallas import tpu as pltpu

_LANE = 128


def _ensemble_linear_kernel(x_ref, w_ref, b_ref, o_ref):
    # x_ref: (E_TILE, B, Din)   w_ref: (E_TILE, Din, TN)
    # b_ref: (E_TILE, 1, TN)    o_ref: (E_TILE, B, TN)
    x = x_ref[...]
    w = w_ref[...]
    if x.dtype != w.dtype:
        # Only reached when W is wider than x (rare); the narrow-W cast is done once in
        # the wrapper so it is not redone per grid step.
        x = x.astype(w.dtype)
    acc = lax.dot_general(
        x, w,
        dimension_numbers=(((2,), (1,)), ((0,), (0,))),   # contract Din, batch over E_TILE
        preferred_element_type=jnp.float32,
    )                                                      # (E_TILE, B, TN) f32
    o_ref[...] = (acc + b_ref[...].astype(jnp.float32)).astype(o_ref.dtype)


def _vmem_config():
    """Generation-aware (budget, scoped-limit, weight-buffer-count, W-slab target)."""
    phys = None
    try:
        info = pltpu.get_tpu_info()
        for name in ("vmem_capacity_bytes", "vmem_bytes", "vmem_size_bytes"):
            phys = getattr(info, name, None)
            if phys:
                break
    except Exception:
        phys = None
    if not phys:
        phys = 64 * 1024 * 1024  # conservative default (v7x per-TC)
    if phys <= 64 * 1024 * 1024:
        # v7x-class: 64 MiB/TC -> leave compiler headroom, shallower weight buffering,
        # but target big per-step W DMAs (HBM ~3.2 TB/s makes per-step overhead costly).
        return 28 * 1024 * 1024, 40 * 1024 * 1024, 2, 8 * 1024 * 1024
    # v5e / v6e: 128 MiB -> use it; triple-buffer the exposed W stream.
    return 56 * 1024 * 1024, 96 * 1024 * 1024, 3, 2 * 1024 * 1024


def _pick_tiles(E, B, Din, Dout, x_itemsize, w_itemsize, b_itemsize, o_itemsize,
                budget_bytes, w_buffers, target_w_bytes):
    """Choose (e_tile, tn). Dout must already be a multiple of 128 (lane-padded)."""

    def footprint(e_tile, tn):
        x_tile = e_tile * B * Din * x_itemsize
        w_tile = e_tile * Din * tn * w_itemsize
        b_tile = e_tile * tn * b_itemsize
        o_tile = e_tile * B * tn * o_itemsize
        acc_f32 = e_tile * B * tn * 4
        # x / b / out double-buffered, W buffered w_buffers-deep.
        return 2 * (x_tile + b_tile + o_tile) + w_buffers * w_tile + acc_f32

    # Prefer the full (contiguous-DMA, lane-dense) Dout; only tile it if e_tile=1 doesn't fit.
    tn = Dout
    if footprint(1, tn) > budget_bytes:
        tn_found = None
        for t in range(Dout - _LANE, 0, -_LANE):
            if Dout % t == 0 and footprint(1, t) <= budget_bytes:
                tn_found = t
                break
        tn = tn_found if tn_found is not None else _LANE  # smallest legal lane-dense tile

    def pick_e(e_cap):
        for cand in range(max(1, e_cap), 0, -1):
            if E % cand == 0 and footprint(cand, tn) <= budget_bytes:
                return cand
        return 1

    # Keep >= 4 grid steps along E when E allows (megacore sharding + pipelining).
    e_tile = pick_e(E // min(E, 4))
    w_slab = e_tile * Din * tn * w_itemsize
    if w_slab < target_w_bytes and E // e_tile > 2:
        # Trade some grid steps for bigger W DMAs, but keep >= 2 steps on the E axis.
        e_tile = max(e_tile, pick_e(E // 2))
    return e_tile, tn


def parallelized_layer_forward(x, W, b, *, vmem_budget_bytes=None):
    """x: (E, B, Din), W: (E, Din, Dout), b: (E, 1, Dout) -> (E, B, Dout).

    W may be stored in bfloat16 (recommended: the layer is HBM-bound and W dominates the
    traffic); accumulation is always f32 and the output keeps x.dtype.
    """
    E, B, Din = x.shape
    Ew, Dw, Dout = W.shape
    assert (Ew, Dw) == (E, Din) and b.shape == (E, 1, Dout)

    out_dtype = x.dtype
    # Cast x once in the wrapper when W is narrower: halves x's HBM stream and hoists the
    # cast out of the per-step kernel body.
    if jnp.dtype(W.dtype).itemsize < jnp.dtype(x.dtype).itemsize:
        x = x.astype(W.dtype)

    # Lane-dense output: pad Dout up to a multiple of 128 so every store is an unmasked vst.
    # TODO(synk): for production, store W/b pre-padded at init (init_parallelized_layer
    # pad_output_dim=True) so this pad does not re-stream W on every call.
    Dp = ((Dout + _LANE - 1) // _LANE) * _LANE
    if Dp != Dout:
        W = jnp.pad(W, ((0, 0), (0, 0), (0, Dp - Dout)))
        b = jnp.pad(b, ((0, 0), (0, 0), (0, Dp - Dout)))

    budget, vmem_limit, w_buffers, target_w = _vmem_config()
    if vmem_budget_bytes is not None:
        budget = vmem_budget_bytes

    e_tile, tn = _pick_tiles(
        E, B, Din, Dp,
        jnp.dtype(x.dtype).itemsize, jnp.dtype(W.dtype).itemsize,
        jnp.dtype(b.dtype).itemsize, jnp.dtype(out_dtype).itemsize,
        budget, w_buffers, target_w,
    )
    grid = (E // e_tile, Dp // tn)

    cost = pl.CostEstimate(
        flops=2 * E * B * Din * Dp,
        transcendentals=0,
        bytes_accessed=(x.size * x.dtype.itemsize
                        + W.size * W.dtype.itemsize
                        + b.size * b.dtype.itemsize
                        + E * B * Dp * jnp.dtype(out_dtype).itemsize),
    )

    # The weight stream is the exposed DMA -> buffer it w_buffers deep (2 is the default).
    if w_buffers != 2:
        w_spec = pl.BlockSpec((e_tile, Din, tn), lambda ei, ni: (ei, 0, ni),
                              pipeline_mode=pl.Buffered(w_buffers))
    else:
        w_spec = pl.BlockSpec((e_tile, Din, tn), lambda ei, ni: (ei, 0, ni))

    out = pl.pallas_call(
        _ensemble_linear_kernel,
        out_shape=jax.ShapeDtypeStruct((E, B, Dp), out_dtype),
        grid=grid,
        in_specs=[
            pl.BlockSpec((e_tile, B, Din), lambda ei, ni: (ei, 0, 0)),
            w_spec,
            pl.BlockSpec((e_tile, 1, tn), lambda ei, ni: (ei, 0, ni)),
        ],
        out_specs=pl.BlockSpec((e_tile, B, tn), lambda ei, ni: (ei, 0, ni)),
        compiler_params=pltpu.CompilerParams(
            # Both grid axes write disjoint output blocks -> parallel (megacore / 2 TCs).
            dimension_semantics=("parallel", "parallel"),
            vmem_limit_bytes=vmem_limit,
        ),
        cost_estimate=cost,
    )(x, W, b)

    if Dp != Dout:
        out = out[..., :Dout]
    return out


def init_parallelized_layer(key, ensemble_size, input_dim, output_dim,
                            w_std_value=1.0, b_init_value=0.0,
                            weight_dtype=jnp.float32, pad_output_dim=False):
    # Mirrors the PyTorch init: W = fmod(randn, 2) * w_std ; b = zeros + b_init_value.
    w_init = jax.random.normal(key, (ensemble_size, input_dim, output_dim),
                               dtype=jnp.float32)
    W = (jnp.fmod(w_init, 2.0) * w_std_value).astype(weight_dtype)
    b = jnp.zeros((ensemble_size, 1, output_dim), dtype=jnp.float32) + b_init_value
    if pad_output_dim and output_dim % _LANE != 0:
        # Store weights already lane-padded so the forward pass never re-pads (zero extra
        # HBM traffic); the caller slices the output to `output_dim`.
        pad = _LANE - output_dim % _LANE
        W = jnp.pad(W, ((0, 0), (0, 0), (0, pad)))
        b = jnp.pad(b, ((0, 0), (0, 0), (0, pad)))
    return W, b


if __name__ == "__main__":
    key = jax.random.PRNGKey(0)
    k_w, k_x, k_w2, k_x2 = jax.random.split(key, 4)

    # --- module-sized demo: E=4, B=8, Din=32, Dout=32 (lane-padded to 128 internally) ----
    ensemble_size, batch, input_dim, output_dim = 4, 8, 32, 32
    W_f32, b = init_parallelized_layer(k_w, ensemble_size, input_dim, output_dim,
                                       w_std_value=1.0, b_init_value=0.0)
    x = jax.random.normal(k_x, (ensemble_size, batch, input_dim), dtype=jnp.float32)

    out_f32 = jax.block_until_ready(parallelized_layer_forward(x, W_f32, b))
    ref_f32 = jnp.einsum("ebi,eio->ebo", x, W_f32) + b
    assert out_f32.shape == (ensemble_size, batch, output_dim)
    assert jnp.allclose(out_f32, ref_f32, atol=1e-5, rtol=1e-5)

    # --- bandwidth-optimized path: W stored in bf16, f32 accumulation --------------------
    W_bf16 = W_f32.astype(jnp.bfloat16)
    out_bf16 = jax.block_until_ready(parallelized_layer_forward(x, W_bf16, b))
    ref_bf16 = jnp.einsum(
        "ebi,eio->ebo",
        x.astype(jnp.bfloat16).astype(jnp.float32),
        W_bf16.astype(jnp.float32),
    ) + b
    assert out_bf16.shape == (ensemble_size, batch, output_dim)
    assert out_bf16.dtype == x.dtype
    assert jnp.allclose(out_bf16, ref_bf16, atol=1e-4, rtol=1e-4)
    assert jnp.allclose(out_bf16, ref_f32, atol=1e-1, rtol=5e-2)

    # --- multi-tile grid test: force E and Dout tiling so the pipelined/multi-step index
    # maps are actually exercised (tiny VMEM budget -> e_tile=1, tn=128, grid=(8, 2)) ------
    E2, B2, Din2, Dout2 = 8, 8, 64, 256
    W2, b2 = init_parallelized_layer(k_w2, E2, Din2, Dout2, w_std_value=0.5,
                                     b_init_value=0.1)
    x2 = jax.random.normal(k_x2, (E2, B2, Din2), dtype=jnp.float32)
    out2 = jax.block_until_ready(
        parallelized_layer_forward(x2, W2, b2, vmem_budget_bytes=64 * 1024))
    ref2 = jnp.einsum("ebi,eio->ebo", x2, W2) + b2
    assert out2.shape == (E2, B2, Dout2)
    assert jnp.allclose(out2, ref2, atol=1e-5, rtol=1e-5)

    print("KERNEL_OK")
</pallas_src>

<mosaic_0001>
module attributes {stable_mosaic.version = 11 : i64} {
  func.func @_ensemble_linear_kernel(%arg0: i32, %arg1: i32, %arg2: memref<2x8x32xf32, #tpu.memory_space<vmem>>, %arg3: memref<2x32x128xf32, #tpu.memory_space<vmem>>, %arg4: memref<2x1x128xf32, #tpu.memory_space<vmem>>, %arg5: memref<2x8x128xf32, #tpu.memory_space<vmem>>) attributes {dimension_semantics = [#tpu.dimension_semantics<parallel>, #tpu.dimension_semantics<parallel>], iteration_bounds = array<i64: 2, 1>, scalar_prefetch = 0 : i64, scratch_operands = 0 : i64, tpu.core_type = #tpu.core_type<tc>, window_params = [{transform_indices = @transform_0, window_bounds = array<i64: 2, 8, 32>}, {transform_indices = @transform_1, window_bounds = array<i64: 2, 32, 128>}, {transform_indices = @transform_2, window_bounds = array<i64: 2, 1, 128>}, {transform_indices = @transform_3, window_bounds = array<i64: 2, 8, 128>}]} {
    %c0 = arith.constant 0 : index
    %c0_0 = arith.constant 0 : index
    %c0_1 = arith.constant 0 : index
    %0 = vector.load %arg2[%c0, %c0_0, %c0_1] : memref<2x8x32xf32, #tpu.memory_space<vmem>>, vector<2x8x32xf32>
    %c0_2 = arith.constant 0 : index
    %c0_3 = arith.constant 0 : index
    %c0_4 = arith.constant 0 : index
    %1 = vector.load %arg3[%c0_2, %c0_3, %c0_4] : memref<2x32x128xf32, #tpu.memory_space<vmem>>, vector<2x32x128xf32>
    %cst = arith.constant dense<0.000000e+00> : vector<2x8x128xf32>
    %2 = tpu.matmul %0, %1, %cst {dimension_numbers = #tpu.dot_dimension_numbers<[2], [1], [1], [2], [0, 0, 0, 1, 1, 2], [0], [0]>} : vector<2x8x32xf32>, vector<2x32x128xf32>, vector<2x8x128xf32> -> vector<2x8x128xf32>
    %c0_5 = arith.constant 0 : index
    %c0_6 = arith.constant 0 : index
    %c0_7 = arith.constant 0 : index
    %3 = vector.load %arg4[%c0_5, %c0_6, %c0_7] : memref<2x1x128xf32, #tpu.memory_space<vmem>>, vector<2x1x128xf32>
    %4 = vector.broadcast %3 : vector<2x1x128xf32> to vector<2x8x128xf32>
    %5 = arith.addf %2, %4 : vector<2x8x128xf32>
    %c0_8 = arith.constant 0 : index
    %c0_9 = arith.constant 0 : index
    %c0_10 = arith.constant 0 : index
    %6 = vector.load %arg5[%c0_8, %c0_9, %c0_10] : memref<2x8x128xf32, #tpu.memory_space<vmem>>, vector<2x8x128xf32>
    tpu.vector_store %arg5[%c0_8, %c0_9, %c0_10], %5 {strides = array<i32>} : memref<2x8x128xf32, #tpu.memory_space<vmem>>, vector<2x8x128xf32>,
    return
  }
  func.func @transform_0(%arg0: i32, %arg1: i32) -> (i32, i32, i32) {
    %c0_i32 = arith.constant 0 : i32
    %c0_i32_0 = arith.constant 0 : i32
    %c0_i32_1 = arith.constant 0 : i32
    return %arg0, %c0_i32, %c0_i32_0 : i32, i32, i32
  }
  func.func @transform_1(%arg0: i32, %arg1: i32) -> (i32, i32, i32) {
    %c0_i32 = arith.constant 0 : i32
    %c0_i32_0 = arith.constant 0 : i32
    return %arg0, %c0_i32, %arg1 : i32, i32, i32
  }
  func.func @transform_2(%arg0: i32, %arg1: i32) -> (i32, i32, i32) {
    %c0_i32 = arith.constant 0 : i32
    %c0_i32_0 = arith.constant 0 : i32
    return %arg0, %c0_i32, %arg1 : i32, i32, i32
  }
  func.func @transform_3(%arg0: i32, %arg1: i32) -> (i32, i32, i32) {
    %c0_i32 = arith.constant 0 : i32
    %c0_i32_0 = arith.constant 0 : i32
    return %arg0, %c0_i32, %arg1 : i32, i32, i32
  }
}

</mosaic_0001>

<llo_original>
// kernel: tpu_custom_call.1
$region0: #{tpu_custom_call.1}
  #allocation0 [shape = 'u32[]', space=smem, size = 0x4, offset = 0x4, fixed_abs, tag = 'smem constant byte address 0x4 - core index']
  #allocation1 [shape = 'u32[72,128]{1,0:T(1,128)}', space=vmem, size = 0x9000, scoped, tag = 'internal scratch']
  %s0 = inlined_call_operand.hbm [shape: f32[4,8,32], index: 0, kind: input, shape index: {}]
  %s1 = inlined_call_operand.hbm [shape: f32[4,32,128], index: 1, kind: input, shape index: {}]
  %s2 = inlined_call_operand.hbm [shape: f32[4,1,128], index: 2, kind: input, shape index: {}]
  %s3 = inlined_call_operand.hbm [shape: f32[4,8,128], index: 3, kind: output, shape index: {}]
  %s4 = sld [smem:[#allocation0]]
  $region57: #{tpu_custom_call.1} parent=0
    _
  %s6 = ssub.s32 1, %s4
  %s7 = scalar_select 0, %s6, %s4
  $region1: #{tpu_custom_call.1} parent=0
    #allocation2 [shape = 'u8[16384]{0}', space=vmem, size = 0x4000, scoped, tag = 'input window, operand 0']
    #allocation3 [shape = 's32[2]{0}', space=sflag, size = 0x8, scoped, tag = 'scoped memory for tpu_custom_call.1']
    #allocation4 [shape = 's32[2]{0}', space=sflag, size = 0x8, scoped, tag = 'scoped memory for tpu_custom_call.1']
    #allocation5 [shape = 'u8[65536]{0}', space=vmem, size = 0x10000, scoped, tag = 'input window, operand 1']
    #allocation6 [shape = 's32[2]{0}', space=sflag, size = 0x8, scoped, tag = 'scoped memory for tpu_custom_call.1']
    #allocation7 [shape = 'u8[2048]{0}', space=vmem, size = 0x800, scoped, tag = 'input window, operand 2']
    #allocation8 [shape = 'u8[16384]{0}', space=vmem, size = 0x4000, scoped, tag = 'output window, operand 0']
    %8 = vsyncpa [#allocation3], 0
    %s9 = scalar_lea.sflag [#allocation3], 1
    %10 = vsyncpa %s9, 0
    %11 = vsyncpa [#allocation6], 0
    %s12 = scalar_lea.sflag [#allocation6], 1
    %13 = vsyncpa %s12, 0
    %14 = vsyncpa [#allocation4], 0
    %s15 = scalar_lea.sflag [#allocation4], 1
    %16 = vsyncpa %s15, 0
    loop: start=0, step=1, limit=4
    $region2: #{tpu_custom_call.1} parent=1 // loop_pre_header
      _
    $region3: #{tpu_custom_call.1} parent=1 // loop_header
      %s18 = sphi 0, %s22
      %p19 = scmp.ge.s32.totalorder %s18, 4
      %s25 = sphi 0, %s37
      %s26 = sphi 0, %s33
      %s27 = sphi 0, %s25
      %s28 = sphi 0, %s26
      %s29 = sphi 0, %s27
      %s30 = sphi 0, %s28
      %s40 = sphi 0, %s42
      %s43 = sphi 0, %s40
      %s44 = sphi 0, %s43
      %s60 = sphi 0, %s44
      %s68 = sphi 0, %s70
      %s71 = sphi 0, %s68
      %s72 = sphi 0, %s71
      %s88 = sphi 0, %s72
      %s96 = sphi 0, %s98
      %s99 = sphi 0, %s96
      %s100 = sphi 0, %s99
      %s116 = sphi 0, %s100
      %s124 = sphi 0, %s126
      %s127 = sphi 0, %s124
      %s128 = sphi 0, %s127
      %s144 = sphi 0, %s128
    $region4: #{tpu_custom_call.1} parent=1 // loop_header_branch
      %21 = sbr.rel (%p19) target = $region8
    $region5: #{tpu_custom_call.1} parent=1 // loop_body
      %s23 = ssub.s32 %s18, 1
      %s24 = ssub.s32 %s18, 2
      %s31 = sadd.s32 1, %s26
      %p32 = scmp.ge.s32.totalorder %s31, 1
      %s33 = scalar_select %p32, 0, %s31
      %s34 = sadd.s32 1, %s25
      %s35 = scalar_select %p32, %s34, %s25
      %p36 = scmp.ge.s32.totalorder %s35, 2
      %s37 = scalar_select %p36, 0, %s35
      %s38 = ssub.s32 %s25, %s37
      %p39 = scmp.eq.s32.totalorder %s38, 0
      %s41 = sadd.s32 %s40, 1
      %s42 = scalar_select %p39, %s40, %s41
      %p45 = pneg %p39
      %p46 = scmp.eq.s32.totalorder %s18, 1
      %p47 = por %p45, %p46
      %p48 = scmp.ne.s32.totalorder %s40, %s43
      %p49 = scmp.eq.s32.totalorder %s18, 0
      %p50 = por %p48, %p49
      %p51 = scmp.ne.s32.totalorder %s40, %s43
      %p52 = scmp.eq.s32.totalorder %s23, 1
      %p53 = por %p51, %p52
      %p54 = scmp.ne.s32.totalorder %s43, %s44
      %p55 = scmp.eq.s32.totalorder %s23, 0
      %p56 = por %p54, %p55
      %p57 = scmp.ne.s32.totalorder %s43, %s44
      %p58 = scmp.eq.s32.totalorder %s24, 1
      %p59 = por %p57, %p58
      %p61 = scmp.ne.s32.totalorder %s44, %s60
      %p62 = scmp.eq.s32.totalorder %s24, 0
      %p63 = por %p61, %p62
      %s64 = ssub.s32 %s25, %s37
      %s65 = ssub.s32 %s26, %s33
      %s66 = sor.u32 %s64, %s65
      %p67 = scmp.eq.s32.totalorder %s66, 0
      %s69 = sadd.s32 %s68, 1
      %s70 = scalar_select %p67, %s68, %s69
      %p73 = pneg %p67
      %p74 = scmp.eq.s32.totalorder %s18, 1
      %p75 = por %p73, %p74
      %p76 = scmp.ne.s32.totalorder %s68, %s71
      %p77 = scmp.eq.s32.totalorder %s18, 0
      %p78 = por %p76, %p77
      %p79 = scmp.ne.s32.totalorder %s68, %s71
      %p80 = scmp.eq.s32.totalorder %s23, 1
      %p81 = por %p79, %p80
      %p82 = scmp.ne.s32.totalorder %s71, %s72
      %p83 = scmp.eq.s32.totalorder %s23, 0
      %p84 = por %p82, %p83
      %p85 = scmp.ne.s32.totalorder %s71, %s72
      %p86 = scmp.eq.s32.totalorder %s24, 1
      %p87 = por %p85, %p86
      %p89 = scmp.ne.s32.totalorder %s72, %s88
      %p90 = scmp.eq.s32.totalorder %s24, 0
      %p91 = por %p89, %p90
      %s92 = ssub.s32 %s25, %s37
      %s93 = ssub.s32 %s26, %s33
      %s94 = sor.u32 %s92, %s93
      %p95 = scmp.eq.s32.totalorder %s94, 0
      %s97 = sadd.s32 %s96, 1
      %s98 = scalar_select %p95, %s96, %s97
      %p101 = pneg %p95
      %p102 = scmp.eq.s32.totalorder %s18, 1
      %p103 = por %p101, %p102
      %p104 = scmp.ne.s32.totalorder %s96, %s99
      %p105 = scmp.eq.s32.totalorder %s18, 0
      %p106 = por %p104, %p105
      %p107 = scmp.ne.s32.totalorder %s96, %s99
      %p108 = scmp.eq.s32.totalorder %s23, 1
      %p109 = por %p107, %p108
      %p110 = scmp.ne.s32.totalorder %s99, %s100
      %p111 = scmp.eq.s32.totalorder %s23, 0
      %p112 = por %p110, %p111
      %p113 = scmp.ne.s32.totalorder %s99, %s100
      %p114 = scmp.eq.s32.totalorder %s24, 1
      %p115 = por %p113, %p114
      %p117 = scmp.ne.s32.totalorder %s100, %s116
      %p118 = scmp.eq.s32.totalorder %s24, 0
      %p119 = por %p117, %p118
      %s120 = ssub.s32 %s25, %s37
      %s121 = ssub.s32 %s26, %s33
      %s122 = sor.u32 %s120, %s121
      %p123 = scmp.eq.s32.totalorder %s122, 0
      %s125 = sadd.s32 %s124, 1
      %s126 = scalar_select %p123, %s124, %s125
      %p129 = pneg %p123
      %p130 = scmp.eq.s32.totalorder %s18, 1
      %p131 = por %p129, %p130
      %p132 = scmp.ne.s32.totalorder %s124, %s127
      %p133 = scmp.eq.s32.totalorder %s18, 0
      %p134 = por %p132, %p133
      %p135 = scmp.ne.s32.totalorder %s124, %s127
      %p136 = scmp.eq.s32.totalorder %s23, 1
      %p137 = por %p135, %p136
      %p138 = scmp.ne.s32.totalorder %s127, %s128
      %p139 = scmp.eq.s32.totalorder %s23, 0
      %p140 = por %p138, %p139
      %p141 = scmp.ne.s32.totalorder %s127, %s128
      %p142 = scmp.eq.s32.totalorder %s24, 1
      %p143 = por %p141, %p142
      %p145 = scmp.ne.s32.totalorder %s128, %s144
      %p146 = scmp.eq.s32.totalorder %s24, 0
      %p147 = por %p145, %p146
      %p148 = scmp.le.s32.totalorder 1, %s18
      %p149 = scmp.lt.s32.totalorder %s18, 3
      %p150 = pnand %p148, %p149
      %p151 = pneg %p150
      // Predicated region
      $region9: #{tpu_custom_call.1} parent=5 // pred_check
        _
      $region10: #{tpu_custom_call.1} parent=5 // pred_check_branch
        %153 = sbr.rel (%p150) target = $region12
      $region11: #{tpu_custom_call.1} parent=5 // pred_region
        %s154 = ssub.s32 %s18, 1
      $region12: #{tpu_custom_call.1} parent=5 // pred_fallthru
        _
      %p155 = scmp.lt.s32.totalorder %s18, 2
      // Predicated region
      $region13: #{tpu_custom_call.1} parent=5 // pred_check
        %p156 = pneg %p155
      $region14: #{tpu_custom_call.1} parent=5 // pred_check_branch
        %158 = sbr.rel (%p156) target = $region16
      $region15: #{tpu_custom_call.1} parent=5 // pred_region
        // Predicated region
        $region17: #{tpu_custom_call.1} parent=15 // pred_check
          %p159 = pneg %p50
        $region18: #{tpu_custom_call.1} parent=15 // pred_check_branch
          %161 = sbr.rel (%p159) target = $region20
        $region19: #{tpu_custom_call.1} parent=15 // pred_region
          %s162 = sand.u32 %s40, 1
          %s163 = scalar_lea.sflag [#allocation3], %s162
          %s164 = sand.u32 %s40, 1
          %s165 = smul.addr %s164, 16
          %s166 = scalar_lea.vmem [#allocation2], %s165
          %s167 = smul.u32 2, %s25
          %169 = vsyncadd %s163, 0
          %s170 = smul.addr %s167, 8
          %s171 = scalar_lea.hbm %s0, %s170
          %s172 = sshll.u32 %s171, 4
          %s173 = int_to_ptr.hbm [resolvable:$true] %s172
          %s174 = sshll.u32 %s166, 4
          %s175 = int_to_ptr.vmem [resolvable:$true] %s174
          %180 = dma.hbm_to_vmem [thread:$0]  %s173, 256, %s175, %s163, 128, 128, 8
        $region20: #{tpu_custom_call.1} parent=15 // pred_fallthru
          _
        // Predicated region
        $region21: #{tpu_custom_call.1} parent=15 // pred_check
          %p181 = pneg %p78
        $region22: #{tpu_custom_call.1} parent=15 // pred_check_branch
          %183 = sbr.rel (%p181) target = $region24
        $region23: #{tpu_custom_call.1} parent=15 // pred_region
          %s184 = sand.u32 %s18, 1
          %s185 = scalar_lea.sflag [#allocation6], %s184
          %s186 = sand.u32 %s68, 1
          %s187 = smul.addr %s186, 64
          %s188 = scalar_lea.vmem [#allocation5], %s187
          %s189 = smul.u32 2, %s25
          %191 = vsyncadd %s185, 0
          %s192 = smul.addr %s189, 4
          %s193 = sadd.s32 %s26, %s192
          %s194 = smul.addr %s193, 8
          %s195 = scalar_lea.hbm %s1, %s194
          %s196 = sshll.u32 %s195, 4
          %s197 = int_to_ptr.hbm [resolvable:$true] %s196
          %s198 = sshll.u32 %s188, 4
          %s199 = int_to_ptr.vmem [resolvable:$true] %s198
          %204 = dma.hbm_to_vmem [thread:$0]  %s197, 1024, %s199, %s185, 128, 128, 8
        $region24: #{tpu_custom_call.1} parent=15 // pred_fallthru
          _
        // Predicated region
        $region25: #{tpu_custom_call.1} parent=15 // pred_check
          %p205 = pneg %p106
        $region26: #{tpu_custom_call.1} parent=15 // pred_check_branch
          %207 = sbr.rel (%p205) target = $region28
        $region27: #{tpu_custom_call.1} parent=15 // pred_region
          %s208 = sand.u32 %s18, 1
          %s209 = scalar_lea.sflag [#allocation6], %s208
          %s210 = sand.u32 %s96, 1
          %s211 = smul.addr %s210, 2
          %s212 = scalar_lea.vmem [#allocation7], %s211
          %s213 = smul.u32 2, %s25
          %215 = vsyncadd %s209, 0
          %s216 = sadd.s32 %s26, %s213
          %s217 = scalar_lea.hbm %s2, %s216
          %s218 = sshll.u32 %s217, 4
          %s219 = int_to_ptr.hbm [resolvable:$true] %s218
          %s220 = sshll.u32 %s212, 4
          %s221 = int_to_ptr.vmem [resolvable:$true] %s220
          %226 = dma.hbm_to_vmem [thread:$0]  %s219, 32, %s221, %s209, 16, 16, 1
        $region28: #{tpu_custom_call.1} parent=15 // pred_fallthru
          _
      $region16: #{tpu_custom_call.1} parent=5 // pred_fallthru
        _
      %p227 = scmp.le.s32.totalorder 1, %s18
      %p228 = scmp.lt.s32.totalorder %s18, 3
      %p229 = pnand %p227, %p228
      %p230 = pneg %p229
      // Predicated region
      $region29: #{tpu_custom_call.1} parent=5 // pred_check
        _
      $region30: #{tpu_custom_call.1} parent=5 // pred_check_branch
        %232 = sbr.rel (%p229) target = $region32
      $region31: #{tpu_custom_call.1} parent=5 // pred_region
        %s233 = ssub.s32 %s18, 1
        %s234 = sand.u32 %s43, 1
        %s235 = scalar_lea.sflag [#allocation3], %s234
        %s236 = sand.u32 %s43, 1
        %s237 = smul.addr %s236, 16
        %s238 = scalar_lea.vmem [#allocation2], %s237
        // Predicated region
        $region33: #{tpu_custom_call.1} parent=31 // pred_check
          %p239 = pneg %p56
        $region34: #{tpu_custom_call.1} parent=31 // pred_check_branch
          %241 = sbr.rel (%p239) target = $region36
        $region35: #{tpu_custom_call.1} parent=31 // pred_region
          %243 = dma.done %s235, 256
        $region36: #{tpu_custom_call.1} parent=31 // pred_fallthru
          _
        %s244 = sand.u32 %s23, 1
        %s245 = scalar_lea.sflag [#allocation6], %s244
        %s246 = sand.u32 %s71, 1
        %s247 = smul.addr %s246, 64
        %s248 = scalar_lea.vmem [#allocation5], %s247
        // Predicated region
        $region37: #{tpu_custom_call.1} parent=31 // pred_check
          %p249 = pneg %p84
        $region38: #{tpu_custom_call.1} parent=31 // pred_check_branch
          %251 = sbr.rel (%p249) target = $region40
        $region39: #{tpu_custom_call.1} parent=31 // pred_region
          %253 = dma.done %s245, 1024
        $region40: #{tpu_custom_call.1} parent=31 // pred_fallthru
          _
        %s254 = sand.u32 %s23, 1
        %s255 = scalar_lea.sflag [#allocation6], %s254
        %s256 = sand.u32 %s99, 1
        %s257 = smul.addr %s256, 2
        %s258 = scalar_lea.vmem [#allocation7], %s257
        // Predicated region
        $region41: #{tpu_custom_call.1} parent=31 // pred_check
          %p259 = pneg %p112
        $region42: #{tpu_custom_call.1} parent=31 // pred_check_branch
          %261 = sbr.rel (%p259) target = $region44
        $region43: #{tpu_custom_call.1} parent=31 // pred_region
          %263 = dma.done %s255, 32
        $region44: #{tpu_custom_call.1} parent=31 // pred_fallthru
          _
        %s264 = sand.u32 %s43, 1
        %s265 = scalar_lea.sflag [#allocation3], %s264
        %s266 = sand.u32 %s43, 1
        %s267 = smul.addr %s266, 16
        %s268 = scalar_lea.vmem [#allocation2], %s267
        %p269 = pneg %p56
        %p270 = pneg %p53
        %s271 = sand.u32 %s23, 1
        %s272 = scalar_lea.sflag [#allocation6], %s271
        %s273 = sand.u32 %s71, 1
        %s274 = smul.addr %s273, 64
        %s275 = scalar_lea.vmem [#allocation5], %s274
        %p276 = pneg %p84
        %p277 = pneg %p81
        %s278 = sand.u32 %s23, 1
        %s279 = scalar_lea.sflag [#allocation6], %s278
        %s280 = sand.u32 %s99, 1
        %s281 = smul.addr %s280, 2
        %s282 = scalar_lea.vmem [#allocation7], %s281
        %p283 = pneg %p112
        %p284 = pneg %p109
        %p285 = pneg %p140
        %p286 = pneg %p137
        %s287 = sand.u32 %s127, 1
        %s288 = scalar_lea.sflag [#allocation4], %s287
        %s289 = sand.u32 %s127, 1
        %s290 = smul.addr %s289, 16
        %s291 = scalar_lea.vmem [#allocation8], %s290
        %s292 = smul.u32 2, %s27
        %s293 = smul.u32 2, %s27
        %s294 = smul.u32 2, %s27
        %s295 = smul.u32 2, %s27
        %v296 = vld [vmem:[%s238] sm:$0xff]
        %v297 = vld [vmem:[%s238 + $0x8] sm:$0xff]
        %v298 = vld [vmem:[%s248] sm:$0xff]
        %v299 = vld [vmem:[%s248 + $0x8] sm:$0xff]
        %v300 = vld [vmem:[%s248 + $0x10] sm:$0xff]
        %v301 = vld [vmem:[%s248 + $0x18] sm:$0xff]
        %v302 = vld [vmem:[%s248 + $0x20] sm:$0xff]
        %v303 = vld [vmem:[%s248 + $0x28] sm:$0xff]
        %v304 = vld [vmem:[%s248 + $0x30] sm:$0xff]
        %v305 = vld [vmem:[%s248 + $0x38] sm:$0xff]
        %v306 = vld [vmem:[%s258] sm:$0x1]
        %v307 = vld [vmem:[%s258 + $0x1] sm:$0x1]
        %v310 = vperm.slane %v306, 0
        %v311 = vperm.slane %v307, 0
        %vm314 = vcmask 261120
        %v316 = vsel %vm314, %v296, 0
        %318 = vmatpush.msra.mxu0 0.0
        %319 = vmatpush.msra.mxu0 0.0
        %320 = vmatpush.msra.mxu0 0.0
        %321 = vmatpush.msra.mxu0 0.0
        %322 = vmatpush.msra.mxu0 0.0
        %323 = vmatpush.msra.mxu0 0.0
        %324 = vmatpush.msra.mxu0 0.0
        %325 = vmatpush.msra.mxu0 0.0
        %326 = vmatpush.msra.mxu0 0.0
        %327 = vmatpush.msra.mxu0 0.0
        %328 = vmatpush.msra.mxu0 0.0
        %329 = vmatpush.msra.mxu0 0.0
        %330 = vmatpush.msra.mxu0 %v301
        %331 = vmatpush.msra.mxu0 %v300
        %332 = vmatpush.msra.mxu0 %v299
        %333 = vmatpush.msra.mxu0 %v298
        %334 = vmatmul.f32.gmra.mxu0 %v316
        %v335 = vpop.f32.mrf.mxu0
        %v336 = vadd.f32 %v310, %v335
        %337 = vdwg.mxu0
        %v339 = vsel %vm314, %v297, 0
        %341 = vmatpush.msra.mxu0 0.0
        %342 = vmatpush.msra.mxu0 0.0
        %343 = vmatpush.msra.mxu0 0.0
        %344 = vmatpush.msra.mxu0 0.0
        %345 = vmatpush.msra.mxu0 0.0
        %346 = vmatpush.msra.mxu0 0.0
        %347 = vmatpush.msra.mxu0 0.0
        %348 = vmatpush.msra.mxu0 0.0
        %349 = vmatpush.msra.mxu0 0.0
        %350 = vmatpush.msra.mxu0 0.0
        %351 = vmatpush.msra.mxu0 0.0
        %352 = vmatpush.msra.mxu0 0.0
        %353 = vmatpush.msra.mxu0 %v305
        %354 = vmatpush.msra.mxu0 %v304
        %355 = vmatpush.msra.mxu0 %v303
        %356 = vmatpush.msra.mxu0 %v302
        %357 = vmatmul.f32.gmra.mxu0 %v339
        %v358 = vpop.f32.mrf.mxu0
        %v359 = vadd.f32 %v311, %v358
        %360 = vdwg.mxu0
        %361 = vst [vmem:[%s291] sm:$0xff] %v336
        %362 = vst [vmem:[%s291 + $0x8] sm:$0xff] %v359
        %s363 = sand.u32 %s127, 1
        %s364 = scalar_lea.sflag [#allocation4], %s363
        %s365 = sand.u32 %s127, 1
        %s366 = smul.addr %s365, 16
        %s367 = scalar_lea.vmem [#allocation8], %s366
        // Predicated region
        $region45: #{tpu_custom_call.1} parent=31 // pred_check
          %p368 = pneg %p137
        $region46: #{tpu_custom_call.1} parent=31 // pred_check_branch
          %370 = sbr.rel (%p368) target = $region48
        $region47: #{tpu_custom_call.1} parent=31 // pred_region
          %s371 = smul.u32 2, %s27
          %373 = vsyncadd %s364, 0
          %s374 = sadd.s32 %s28, %s371
          %s375 = smul.addr %s374, 8
          %s376 = scalar_lea.hbm %s3, %s375
          %s377 = sshll.u32 %s367, 4
          %s378 = int_to_ptr.vmem [resolvable:$true] %s377
          %s379 = sshll.u32 %s376, 4
          %s380 = int_to_ptr.hbm [resolvable:$true] %s379
          %385 = dma.vmem_to_hbm [thread:$0]  %s378, 256, %s380, %s364, 128, 128, 8
        $region48: #{tpu_custom_call.1} parent=31 // pred_fallthru
          _
      $region32: #{tpu_custom_call.1} parent=5 // pred_fallthru
        _
      %p386 = scmp.le.s32.totalorder 2, %s18
      // Predicated region
      $region49: #{tpu_custom_call.1} parent=5 // pred_check
        %p387 = pneg %p386
      $region50: #{tpu_custom_call.1} parent=5 // pred_check_branch
        %389 = sbr.rel (%p387) target = $region52
      $region51: #{tpu_custom_call.1} parent=5 // pred_region
        %s390 = ssub.s32 %s18, 2
        // Predicated region
        $region53: #{tpu_custom_call.1} parent=51 // pred_check
          %p391 = pneg %p143
        $region54: #{tpu_custom_call.1} parent=51 // pred_check_branch
          %393 = sbr.rel (%p391) target = $region56
        $region55: #{tpu_custom_call.1} parent=51 // pred_region
          %s394 = sand.u32 %s128, 1
          %s395 = scalar_lea.sflag [#allocation4], %s394
          %s396 = sand.u32 %s128, 1
          %s397 = smul.addr %s396, 16
          %s398 = scalar_lea.vmem [#allocation8], %s397
          %400 = dma.done %s395, 256
        $region56: #{tpu_custom_call.1} parent=51 // pred_fallthru
          _
      $region52: #{tpu_custom_call.1} parent=5 // pred_fallthru
        _
    $region6: #{tpu_custom_call.1} parent=1 // loop_footer
      %s22 = sadd.s32 1, %s18
    $region7: #{tpu_custom_call.1} parent=1 // loop_footer_branch
      %17 = sbr.rel target = $region3
    $region8: #{tpu_custom_call.1} parent=1 // loop_exit
      _
    %401 = vsyncpa [#allocation3], 1
    %s402 = scalar_lea.sflag [#allocation3], 1
    %403 = vsyncpa %s402, 1
    %404 = vsyncpa [#allocation6], 1
    %s405 = scalar_lea.sflag [#allocation6], 1
    %406 = vsyncpa %s405, 1
    %407 = vsyncpa [#allocation4], 1
    %s408 = scalar_lea.sflag [#allocation4], 1
    %409 = vsyncpa %s408, 1

</llo_original>
